<compile_context>
chip_gen: v7x
topology: tpu7x:2x2x1
jax: 0.10.0
libtpu: 0.0.40
codegen_flags: <defaults>
</compile_context>

<pallas_src>
import functools

import jax
import jax.numpy as jnp
from jax import lax
from jax.experimental import pallas as pl
from jax.experimental.pallas import tpu as pltpu


_LANE = 128
_OUT_SLAB = (8, 128)           # lane-dense per-tile partial-sum slab
_DEFAULT_C_CHUNK = 2048        # lanes of C streamed per grid step (mult of 128)
_MAX_TILE_N = 8192


def _round_up(x, m):
    return ((x + m - 1) // m) * m


def _focal_partial_kernel(logits_ref, target_ref, out_ref, m_sc, s_sc, g_sc,
                          *, n_valid, tile_n):
    """Online-logsumexp cross-entropy partial sums for one batch tile.

    Grid: (batch tiles [parallel], C chunks [arbitrary]).
      logits_ref: (TILE_N, CC) chunk of logits in the input dtype.
      target_ref: (TILE_N, 1) int32 class indices.
      out_ref:    (8, 128) f32 slab; every element holds this batch tile's
                  partial sum of per-row NLL (full, unmasked lane-dense store).
      m_sc/s_sc/g_sc: (TILE_N, 1) f32 running row-max / rescaled exp-sum /
                  gathered target logit, persistent across the C-chunk axis.
    """
    i = pl.program_id(0)
    j = pl.program_id(1)
    num_j = pl.num_programs(1)

    @pl.when(j == 0)
    def _init():
        m_sc[...] = jnp.full(m_sc.shape, -jnp.inf, dtype=jnp.float32)
        s_sc[...] = jnp.zeros(s_sc.shape, dtype=jnp.float32)
        g_sc[...] = jnp.zeros(g_sc.shape, dtype=jnp.float32)

    # Promote to f32 *before* the max/sub path (parity with torch's f32
    # cross_entropy accumulation for bf16 inputs).
    x = logits_ref[...].astype(jnp.float32)                  # (TILE_N, CC)
    t = target_ref[...]                                      # (TILE_N, 1)
    tn, cc = x.shape

    col = lax.broadcasted_iota(jnp.int32, (tn, cc), 1) + j * cc

    # Online logsumexp update (running max + rescaled exp-sum).
    m_prev = m_sc[...]
    m_new = jnp.maximum(m_prev, jnp.max(x, axis=-1, keepdims=True))
    alpha = jnp.exp(m_prev - m_new)                          # == 0 on chunk 0
    s_sc[...] = alpha * s_sc[...] + jnp.sum(jnp.exp(x - m_new),
                                            axis=-1, keepdims=True)
    # Fused target-class gather (one-hot compare) over the same chunk vregs.
    g_sc[...] = g_sc[...] + jnp.sum(jnp.where(col == t, x, 0.0),
                                    axis=-1, keepdims=True)
    m_sc[...] = m_new

    @pl.when(j == num_j - 1)
    def _finalize():
        # nll = logsumexp(x) - x[target]
        nll = jnp.log(s_sc[...]) + m_sc[...] - g_sc[...]     # (TILE_N, 1)
        # Mask rows past the true batch size (wrapper zero-padding).
        row = lax.broadcasted_iota(jnp.int32, (tn, 1), 0) + i * tile_n
        nll = jnp.where(row < n_valid, nll, 0.0)
        out_ref[...] = jnp.full(out_ref.shape, jnp.sum(nll), dtype=jnp.float32)


def _tpu_vmem_capacity_bytes():
    try:
        return int(pltpu.get_tpu_info().vmem_capacity_bytes)
    except Exception:
        return 64 * 1024 * 1024          # conservative (v7x-sized) default


def focal_loss(logits, target, gamma=0, tile_n=None, c_chunk=None):
    """logits: (N, C) float, target: (N,) int class indices -> scalar f32."""
    n, c = logits.shape
    db = jnp.dtype(logits.dtype).itemsize

    # Very narrow class counts use < C/128 of every lane row; XLA's fused
    # softmax-CE beats the kernel there, so fall back to plain JAX.
    if c < _LANE:
        logprobs = jax.nn.log_softmax(logits.astype(jnp.float32), axis=-1)
        nll = -jnp.take_along_axis(logprobs, target.astype(jnp.int32)[:, None],
                                   axis=-1)[:, 0]
        logp = jnp.mean(nll)
        p = jnp.exp(-logp)
        return (1.0 - p) ** gamma * logp

    # ---- generation-aware VMEM budgets -------------------------------------
    vmem_cap = _tpu_vmem_capacity_bytes()
    big_vmem = vmem_cap >= 96 * 1024 * 1024      # v5e / v6e: 128 MiB physical
    if big_vmem:
        total_budget = 48 * 1024 * 1024          # working-set budget
        vmem_limit = 80 * 1024 * 1024            # scoped-VMEM request
    else:                                        # v7x-class: 64 MiB physical
        total_budget = 36 * 1024 * 1024          # keep well under 64 MiB
        vmem_limit = 48 * 1024 * 1024

    # Packed-sublane multiple for the input dtype (8 f32 / 16 bf16 / 32 int8).
    sub = max(8, 32 // db)

    # ---- C chunking (online logsumexp along grid axis 1) -------------------
    if c_chunk is None:
        c_chunk = _DEFAULT_C_CHUNK
    if c <= c_chunk:
        cc = c                                   # single chunk == full row
        c_pad = c
    else:
        cc = _round_up(min(c_chunk, c), _LANE)
        c_pad = _round_up(c, cc)
    num_chunks = c_pad // cc

    # ---- batch tile size: size purely by bytes against the VMEM budget -----
    # Per row: double-buffered logits chunk + lane-padded int32 target block
    # (x2 buffers) + 3 lane-padded f32 scratch columns + ~4 full-width f32/i32
    # body temporaries per chunk.
    per_row = (2 * cc * db            # logits chunk, double-buffered
               + 2 * _LANE * 4        # (TILE_N, 1) int32 targets, lane-padded
               + 3 * _LANE * 4        # m/s/g scratch, lane-padded
               + 4 * cc * 4)          # f32/int32 body temporaries
    if tile_n is None:
        tile_n = max(sub, (total_budget // per_row) // sub * sub)
        tile_n = min(tile_n, _MAX_TILE_N, _round_up(n, sub))
        if not big_vmem and n > sub:
            # v7x has 2 TensorCores: guarantee >= 2 grid steps on the
            # "parallel" batch axis so both cores get work.
            tile_n = min(tile_n, _round_up((n + 1) // 2, sub))
    else:
        tile_n = max(sub, _round_up(int(tile_n), sub))

    n_pad = _round_up(n, tile_n)
    num_tiles = n_pad // tile_n

    # ---- pad inputs ---------------------------------------------------------
    if c_pad != c:
        # Pad classes with the most-negative finite value: exp underflows to 0
        # and padded columns can never equal a real target index.
        fill = jnp.finfo(logits.dtype).min
        logits = jnp.pad(logits, ((0, 0), (0, c_pad - c)), constant_values=fill)
    if n_pad != n:
        logits = jnp.pad(logits, ((0, n_pad - n), (0, 0)))
        target = jnp.pad(target, (0, n_pad - n))
    target2d = target.astype(jnp.int32).reshape(n_pad, 1)

    kernel = functools.partial(_focal_partial_kernel, n_valid=n, tile_n=tile_n)

    est_bytes = (n_pad * c_pad * db + n_pad * 4
                 + num_tiles * _OUT_SLAB[0] * _OUT_SLAB[1] * 4)

    partials = pl.pallas_call(
        kernel,
        grid=(num_tiles, num_chunks),
        in_specs=[
            # TODO(synk): sweep pipeline_mode=pl.Buffered(3) on the logits spec
            # if profiling shows DMA exposed behind the reduce/store tail.
            pl.BlockSpec((tile_n, cc), lambda i, j: (i, j)),   # logits chunk
            pl.BlockSpec((tile_n, 1), lambda i, j: (i, 0)),    # target indices
        ],
        out_specs=pl.BlockSpec(_OUT_SLAB, lambda i, j: (i, 0)),
        out_shape=jax.ShapeDtypeStruct(
            (num_tiles * _OUT_SLAB[0], _OUT_SLAB[1]), jnp.float32),
        scratch_shapes=[pltpu.VMEM((tile_n, 1), jnp.float32)] * 3,
        compiler_params=pltpu.CompilerParams(
            dimension_semantics=("parallel", "arbitrary"),
            vmem_limit_bytes=int(vmem_limit),
        ),
        cost_estimate=pl.CostEstimate(
            flops=8 * n_pad * c_pad,
            transcendentals=n_pad * c_pad,
            bytes_accessed=est_bytes,
        ),
    )(logits, target2d)

    # Finalize (tiny, plain JAX): every element of a tile's (8,128) slab holds
    # the same partial sum, so a dense reduce / slab-size replaces the old
    # strided gather.  Then the focal modulation on the scalar batch mean,
    # faithful to the PyTorch module.
    logp = jnp.sum(partials) / (float(_OUT_SLAB[0] * _OUT_SLAB[1]) * n)
    p = jnp.exp(-logp)
    return (1.0 - p) ** gamma * logp


def _reference_focal_loss(logits, target, gamma=0):
    # Pure-JAX reference of the PyTorch forward, for sanity checking.
    logprobs = jax.nn.log_softmax(logits.astype(jnp.float32), axis=-1)
    nll = -jnp.take_along_axis(logprobs, target[:, None], axis=-1)[:, 0]
    logp = jnp.mean(nll)
    p = jnp.exp(-logp)
    return (1.0 - p) ** gamma * logp


if __name__ == "__main__":
    key = jax.random.PRNGKey(0)
    k1, k2, k3, k4, k5, k6 = jax.random.split(key, 6)

    # 1) f32 logits, wide enough C for the Pallas path, ragged batch (N not a
    #    multiple of the tile) -> wrapper row padding + in-kernel masking,
    #    multi-step "parallel" batch grid, focal term exercised.
    N, C = 24, 256
    logits = jax.random.normal(k1, (N, C), dtype=jnp.float32)
    target = jax.random.randint(k2, (N,), 0, C, dtype=jnp.int32)
    loss = focal_loss(logits, target, gamma=2, tile_n=16)
    jax.block_until_ready(loss)
    ref = _reference_focal_loss(logits, target, gamma=2)
    assert jnp.allclose(loss, ref, rtol=1e-5, atol=1e-6), (loss, ref)

    # 2) Exercise the online-logsumexp C-chunking (C not a multiple of the
    #    chunk -> class padding with finfo.min) and the default tile chooser.
    N2, C2 = 16, 320
    logits2 = jax.random.normal(k3, (N2, C2), dtype=jnp.float32)
    target2 = jax.random.randint(k4, (N2,), 0, C2, dtype=jnp.int32)
    loss2 = focal_loss(logits2, target2, gamma=0, c_chunk=128)
    jax.block_until_ready(loss2)
    ref2 = _reference_focal_loss(logits2, target2, gamma=0)
    assert jnp.allclose(loss2, ref2, rtol=1e-5, atol=1e-6), (loss2, ref2)

    # 3) bf16 logits: f32 promotion happens in-kernel before the max/sub path.
    N3, C3 = 32, 128
    logits3 = jax.random.normal(k5, (N3, C3), dtype=jnp.float32).astype(jnp.bfloat16)
    target3 = jax.random.randint(k6, (N3,), 0, C3, dtype=jnp.int32)
    loss3 = focal_loss(logits3, target3, gamma=2)
    jax.block_until_ready(loss3)
    ref3 = _reference_focal_loss(logits3, target3, gamma=2)
    assert jnp.allclose(loss3, ref3, rtol=1e-4, atol=1e-5), (loss3, ref3)

    print("KERNEL_OK")
</pallas_src>

<mosaic_0001>
module attributes {stable_mosaic.version = 11 : i64} {
  func.func @_focal_partial_kernel(%arg0: i32, %arg1: i32, %arg2: memref<16x256xf32, #tpu.memory_space<vmem>>, %arg3: memref<16x1xi32, #tpu.memory_space<vmem>>, %arg4: memref<8x128xf32, #tpu.memory_space<vmem>>, %arg5: memref<16x1xf32, #tpu.memory_space<vmem>>, %arg6: memref<16x1xf32, #tpu.memory_space<vmem>>, %arg7: memref<16x1xf32, #tpu.memory_space<vmem>>) attributes {dimension_semantics = [#tpu.dimension_semantics<parallel>, #tpu.dimension_semantics<arbitrary>], iteration_bounds = array<i64: 2, 1>, scalar_prefetch = 0 : i64, scratch_operands = 3 : i64, tpu.core_type = #tpu.core_type<tc>, window_params = [{transform_indices = @transform_0, window_bounds = array<i64: 16, 256>}, {transform_indices = @transform_1, window_bounds = array<i64: 16, 1>}, {transform_indices = @transform_2, window_bounds = array<i64: 8, 128>}]} {
    %c0_i32 = arith.constant 0 : i32
    %0 = arith.cmpi eq, %arg1, %c0_i32 : i32
    %1 = arith.extui %0 : i1 to i32
    %c0_i32_0 = arith.constant 0 : i32
    %2 = arith.cmpi ne, %1, %c0_i32_0 : i32
    scf.if %2 {
      %cst_21 = arith.constant 0xFF800000 : f32
      %37 = vector.broadcast %cst_21 : f32 to vector<16x1xf32>
      %c0_22 = arith.constant 0 : index
      %c0_23 = arith.constant 0 : index
      %38 = vector.load %arg5[%c0_22, %c0_23] : memref<16x1xf32, #tpu.memory_space<vmem>>, vector<16x1xf32>
      tpu.vector_store %arg5[%c0_22, %c0_23], %37 {strides = array<i32>} : memref<16x1xf32, #tpu.memory_space<vmem>>, vector<16x1xf32>,
      %cst_24 = arith.constant 0.000000e+00 : f32
      %39 = vector.broadcast %cst_24 : f32 to vector<16x1xf32>
      %c0_25 = arith.constant 0 : index
      %c0_26 = arith.constant 0 : index
      %40 = vector.load %arg6[%c0_25, %c0_26] : memref<16x1xf32, #tpu.memory_space<vmem>>, vector<16x1xf32>
      tpu.vector_store %arg6[%c0_25, %c0_26], %39 {strides = array<i32>} : memref<16x1xf32, #tpu.memory_space<vmem>>, vector<16x1xf32>,
      %cst_27 = arith.constant 0.000000e+00 : f32
      %41 = vector.broadcast %cst_27 : f32 to vector<16x1xf32>
      %c0_28 = arith.constant 0 : index
      %c0_29 = arith.constant 0 : index
      %42 = vector.load %arg7[%c0_28, %c0_29] : memref<16x1xf32, #tpu.memory_space<vmem>>, vector<16x1xf32>
      tpu.vector_store %arg7[%c0_28, %c0_29], %41 {strides = array<i32>} : memref<16x1xf32, #tpu.memory_space<vmem>>, vector<16x1xf32>,
    } else {
    }
    %c0 = arith.constant 0 : index
    %c0_1 = arith.constant 0 : index
    %3 = vector.load %arg2[%c0, %c0_1] : memref<16x256xf32, #tpu.memory_space<vmem>>, vector<16x256xf32>
    %c0_2 = arith.constant 0 : index
    %c0_3 = arith.constant 0 : index
    %4 = vector.load %arg3[%c0_2, %c0_3] : memref<16x1xi32, #tpu.memory_space<vmem>>, vector<16x1xi32>
    %5 = tpu.iota {dimensions = array<i32: 1>} : vector<16x256xi32>
    %c256_i32 = arith.constant 256 : i32
    %6 = arith.muli %arg1, %c256_i32 : i32
    %7 = vector.broadcast %6 : i32 to vector<16x256xi32>
    %8 = arith.addi %5, %7 : vector<16x256xi32>
    %c0_4 = arith.constant 0 : index
    %c0_5 = arith.constant 0 : index
    %9 = vector.load %arg5[%c0_4, %c0_5] : memref<16x1xf32, #tpu.memory_space<vmem>>, vector<16x1xf32>
    %cst = arith.constant dense<0xFF800000> : vector<16xf32>
    %10 = vector.multi_reduction <maximumf>, %3, %cst [1] : vector<16x256xf32> to vector<16xf32>
    %11 = vector.shape_cast %10 : vector<16xf32> to vector<16x1xf32>
    %12 = arith.maximumf %9, %11 : vector<16x1xf32>
    %13 = arith.subf %9, %12 : vector<16x1xf32>
    %14 = math.exp %13 : vector<16x1xf32>
    %c0_6 = arith.constant 0 : index
    %c0_7 = arith.constant 0 : index
    %15 = vector.load %arg6[%c0_6, %c0_7] : memref<16x1xf32, #tpu.memory_space<vmem>>, vector<16x1xf32>
    %16 = arith.mulf %14, %15 : vector<16x1xf32>
    %17 = vector.broadcast %12 : vector<16x1xf32> to vector<16x256xf32>
    %18 = arith.subf %3, %17 : vector<16x256xf32>
    %19 = math.exp %18 : vector<16x256xf32>
    %cst_8 = arith.constant dense<0.000000e+00> : vector<16xf32>
    %20 = vector.multi_reduction <add>, %19, %cst_8 [1] : vector<16x256xf32> to vector<16xf32>
    %21 = vector.shape_cast %20 : vector<16xf32> to vector<16x1xf32>
    %22 = arith.addf %16, %21 : vector<16x1xf32>
    %c0_9 = arith.constant 0 : index
    %c0_10 = arith.constant 0 : index
    %23 = vector.load %arg6[%c0_9, %c0_10] : memref<16x1xf32, #tpu.memory_space<vmem>>, vector<16x1xf32>
    tpu.vector_store %arg6[%c0_9, %c0_10], %22 {strides = array<i32>} : memref<16x1xf32, #tpu.memory_space<vmem>>, vector<16x1xf32>,
    %c0_11 = arith.constant 0 : index
    %c0_12 = arith.constant 0 : index
    %24 = vector.load %arg7[%c0_11, %c0_12] : memref<16x1xf32, #tpu.memory_space<vmem>>, vector<16x1xf32>
    %25 = vector.broadcast %4 : vector<16x1xi32> to vector<16x256xi32>
    %26 = arith.cmpi eq, %8, %25 : vector<16x256xi32>
    %cst_13 = arith.constant 0.000000e+00 : f32
    %27 = vector.broadcast %cst_13 : f32 to vector<16x256xf32>
    %28 = arith.select %26, %3, %27 : vector<16x256xi1>, vector<16x256xf32>
    %cst_14 = arith.constant dense<0.000000e+00> : vector<16xf32>
    %29 = vector.multi_reduction <add>, %28, %cst_14 [1] : vector<16x256xf32> to vector<16xf32>
    %30 = vector.shape_cast %29 : vector<16xf32> to vector<16x1xf32>
    %31 = arith.addf %24, %30 : vector<16x1xf32>
    %c0_15 = arith.constant 0 : index
    %c0_16 = arith.constant 0 : index
    %32 = vector.load %arg7[%c0_15, %c0_16] : memref<16x1xf32, #tpu.memory_space<vmem>>, vector<16x1xf32>
    tpu.vector_store %arg7[%c0_15, %c0_16], %31 {strides = array<i32>} : memref<16x1xf32, #tpu.memory_space<vmem>>, vector<16x1xf32>,
    %c0_17 = arith.constant 0 : index
    %c0_18 = arith.constant 0 : index
    %33 = vector.load %arg5[%c0_17, %c0_18] : memref<16x1xf32, #tpu.memory_space<vmem>>, vector<16x1xf32>
    tpu.vector_store %arg5[%c0_17, %c0_18], %12 {strides = array<i32>} : memref<16x1xf32, #tpu.memory_space<vmem>>, vector<16x1xf32>,
    %c0_i32_19 = arith.constant 0 : i32
    %34 = arith.cmpi eq, %arg1, %c0_i32_19 : i32
    %35 = arith.extui %34 : i1 to i32
    %c0_i32_20 = arith.constant 0 : i32
    %36 = arith.cmpi ne, %35, %c0_i32_20 : i32
    scf.if %36 {
      %c0_21 = arith.constant 0 : index
      %c0_22 = arith.constant 0 : index
      %37 = vector.load %arg6[%c0_21, %c0_22] : memref<16x1xf32, #tpu.memory_space<vmem>>, vector<16x1xf32>
      %38 = math.log %37 : vector<16x1xf32>
      %c0_23 = arith.constant 0 : index
      %c0_24 = arith.constant 0 : index
      %39 = vector.load %arg5[%c0_23, %c0_24] : memref<16x1xf32, #tpu.memory_space<vmem>>, vector<16x1xf32>
      %40 = arith.addf %38, %39 : vector<16x1xf32>
      %c0_25 = arith.constant 0 : index
      %c0_26 = arith.constant 0 : index
      %41 = vector.load %arg7[%c0_25, %c0_26] : memref<16x1xf32, #tpu.memory_space<vmem>>, vector<16x1xf32>
      %42 = arith.subf %40, %41 : vector<16x1xf32>
      %43 = tpu.iota {dimensions = array<i32: 0>} : vector<16x1xi32>
      %c16_i32 = arith.constant 16 : i32
      %44 = arith.muli %arg0, %c16_i32 : i32
      %45 = vector.broadcast %44 : i32 to vector<16x1xi32>
      %46 = arith.addi %43, %45 : vector<16x1xi32>
      %c24_i32 = arith.constant 24 : i32
      %47 = vector.broadcast %c24_i32 : i32 to vector<16x1xi32>
      %48 = arith.cmpi slt, %46, %47 : vector<16x1xi32>
      %cst_27 = arith.constant 0.000000e+00 : f32
      %49 = vector.broadcast %cst_27 : f32 to vector<16x1xf32>
      %50 = arith.select %48, %42, %49 : vector<16x1xi1>, vector<16x1xf32>
      %51 = vector.shape_cast %50 : vector<16x1xf32> to vector<1x16x1xf32>
      %cst_28 = arith.constant dense<0.000000e+00> : vector<1xf32>
      %52 = vector.multi_reduction <add>, %51, %cst_28 [1, 2] : vector<1x16x1xf32> to vector<1xf32>
      %53 = vector.shape_cast %52 : vector<1xf32> to vector<1x1x1xf32>
      %54 = vector.extract %53[0, 0, 0] : f32 from vector<1x1x1xf32>
      %55 = vector.broadcast %54 : f32 to vector<8x128xf32>
      %c0_29 = arith.constant 0 : index
      %c0_30 = arith.constant 0 : index
      %56 = vector.load %arg4[%c0_29, %c0_30] : memref<8x128xf32, #tpu.memory_space<vmem>>, vector<8x128xf32>
      tpu.vector_store %arg4[%c0_29, %c0_30], %55 {strides = array<i32>} : memref<8x128xf32, #tpu.memory_space<vmem>>, vector<8x128xf32>,
    } else {
    }
    return
  }
  func.func @transform_0(%arg0: i32, %arg1: i32) -> (i32, i32) {
    %c0_i32 = arith.constant 0 : i32
    return %arg0, %arg1 : i32, i32
  }
  func.func @transform_1(%arg0: i32, %arg1: i32) -> (i32, i32) {
    %c0_i32 = arith.constant 0 : i32
    %c0_i32_0 = arith.constant 0 : i32
    return %arg0, %c0_i32 : i32, i32
  }
  func.func @transform_2(%arg0: i32, %arg1: i32) -> (i32, i32) {
    %c0_i32 = arith.constant 0 : i32
    %c0_i32_0 = arith.constant 0 : i32
    return %arg0, %c0_i32 : i32, i32
  }
}

</mosaic_0001>

<llo_original>
// kernel: tpu_custom_call.1
$region0: #{tpu_custom_call.1}
  #allocation0 [shape = 'u32[]', space=smem, size = 0x4, offset = 0x4, fixed_abs, tag = 'smem constant byte address 0x4 - core index']
  #allocation1 [shape = 'u32[144,128]{1,0:T(1,128)}', space=vmem, size = 0x12000, scoped, tag = 'internal scratch']
  #allocation2 [shape = 'f32[16,1]{1,0:T(8,128)}', space=vmem, size = 0x2000, scoped, tag = 'scratch operand']
  #allocation3 [shape = 'f32[16,1]{1,0:T(8,128)}', space=vmem, size = 0x2000, scoped, tag = 'scratch operand']
  #allocation4 [shape = 'f32[16,1]{1,0:T(8,128)}', space=vmem, size = 0x2000, scoped, tag = 'scratch operand']
  %s0 = inlined_call_operand.hbm [shape: f32[32,256], index: 0, kind: input, shape index: {}]
  %s1 = inlined_call_operand.vmem [shape: s32[32,1], index: 1, kind: input, shape index: {}]
  %s2 = inlined_call_operand.hbm [shape: f32[16,128], index: 2, kind: output, shape index: {}]
  %s3 = sld [smem:[#allocation0]]
  $region53: #{tpu_custom_call.1} parent=0
    _
  %s5 = ssub.s32 1, %s3
  %s6 = scalar_select 0, %s5, %s3
  $region1: #{tpu_custom_call.1} parent=0
    #allocation5 [shape = 'u8[32768]{0}', space=vmem, size = 0x8000, scoped, tag = 'input window, operand 0']
    #allocation6 [shape = 's32[2]{0}', space=sflag, size = 0x8, scoped, tag = 'scoped memory for tpu_custom_call.1']
    #allocation7 [shape = 's32[2]{0}', space=sflag, size = 0x8, scoped, tag = 'scoped memory for tpu_custom_call.1']
    #allocation8 [shape = 'u8[8192]{0}', space=vmem, size = 0x2000, scoped, tag = 'output window, operand 0']
    %7 = vsyncpa [#allocation6], 0
    %s8 = scalar_lea.sflag [#allocation6], 1
    %9 = vsyncpa %s8, 0
    %10 = vsyncpa [#allocation7], 0
    %s11 = scalar_lea.sflag [#allocation7], 1
    %12 = vsyncpa %s11, 0
    loop: start=0, step=1, limit=4
    $region2: #{tpu_custom_call.1} parent=1 // loop_pre_header
      _
    $region3: #{tpu_custom_call.1} parent=1 // loop_header
      %s14 = sphi 0, %s18
      %p15 = scmp.ge.s32.totalorder %s14, 4
      %s21 = sphi 0, %s33
      %s22 = sphi 0, %s29
      %s23 = sphi 0, %s21
      %s24 = sphi 0, %s22
      %s25 = sphi 0, %s23
      %s26 = sphi 0, %s24
      %s38 = sphi 0, %s40
      %s41 = sphi 0, %s38
      %s42 = sphi 0, %s41
      %s58 = sphi 0, %s42
      %s64 = sphi 0, %s66
      %s67 = sphi 0, %s64
      %s68 = sphi 0, %s67
      %s84 = sphi 0, %s68
      %s90 = sphi 0, %s92
      %s93 = sphi 0, %s90
      %s94 = sphi 0, %s93
      %s110 = sphi 0, %s94
    $region4: #{tpu_custom_call.1} parent=1 // loop_header_branch
      %17 = sbr.rel (%p15) target = $region8
    $region5: #{tpu_custom_call.1} parent=1 // loop_body
      %s19 = ssub.s32 %s14, 1
      %s20 = ssub.s32 %s14, 2
      %s27 = sadd.s32 1, %s22
      %p28 = scmp.ge.s32.totalorder %s27, 1
      %s29 = scalar_select %p28, 0, %s27
      %s30 = sadd.s32 1, %s21
      %s31 = scalar_select %p28, %s30, %s21
      %p32 = scmp.ge.s32.totalorder %s31, 2
      %s33 = scalar_select %p32, 0, %s31
      %s34 = ssub.s32 %s21, %s33
      %s35 = ssub.s32 %s22, %s29
      %s36 = sor.u32 %s34, %s35
      %p37 = scmp.eq.s32.totalorder %s36, 0
      %s39 = sadd.s32 %s38, 1
      %s40 = scalar_select %p37, %s38, %s39
      %p43 = pneg %p37
      %p44 = scmp.eq.s32.totalorder %s14, 1
      %p45 = por %p43, %p44
      %p46 = scmp.ne.s32.totalorder %s38, %s41
      %p47 = scmp.eq.s32.totalorder %s14, 0
      %p48 = por %p46, %p47
      %p49 = scmp.ne.s32.totalorder %s38, %s41
      %p50 = scmp.eq.s32.totalorder %s19, 1
      %p51 = por %p49, %p50
      %p52 = scmp.ne.s32.totalorder %s41, %s42
      %p53 = scmp.eq.s32.totalorder %s19, 0
      %p54 = por %p52, %p53
      %p55 = scmp.ne.s32.totalorder %s41, %s42
      %p56 = scmp.eq.s32.totalorder %s20, 1
      %p57 = por %p55, %p56
      %p59 = scmp.ne.s32.totalorder %s42, %s58
      %p60 = scmp.eq.s32.totalorder %s20, 0
      %p61 = por %p59, %p60
      %s62 = ssub.s32 %s21, %s33
      %p63 = scmp.eq.s32.totalorder %s62, 0
      %s65 = sadd.s32 %s64, 1
      %s66 = scalar_select %p63, %s64, %s65
      %p69 = pneg %p63
      %p70 = scmp.eq.s32.totalorder %s14, 1
      %p71 = por %p69, %p70
      %p72 = scmp.ne.s32.totalorder %s64, %s67
      %p73 = scmp.eq.s32.totalorder %s14, 0
      %p74 = por %p72, %p73
      %p75 = scmp.ne.s32.totalorder %s64, %s67
      %p76 = scmp.eq.s32.totalorder %s19, 1
      %p77 = por %p75, %p76
      %p78 = scmp.ne.s32.totalorder %s67, %s68
      %p79 = scmp.eq.s32.totalorder %s19, 0
      %p80 = por %p78, %p79
      %p81 = scmp.ne.s32.totalorder %s67, %s68
      %p82 = scmp.eq.s32.totalorder %s20, 1
      %p83 = por %p81, %p82
      %p85 = scmp.ne.s32.totalorder %s68, %s84
      %p86 = scmp.eq.s32.totalorder %s20, 0
      %p87 = por %p85, %p86
      %s88 = ssub.s32 %s21, %s33
      %p89 = scmp.eq.s32.totalorder %s88, 0
      %s91 = sadd.s32 %s90, 1
      %s92 = scalar_select %p89, %s90, %s91
      %p95 = pneg %p89
      %p96 = scmp.eq.s32.totalorder %s14, 1
      %p97 = por %p95, %p96
      %p98 = scmp.ne.s32.totalorder %s90, %s93
      %p99 = scmp.eq.s32.totalorder %s14, 0
      %p100 = por %p98, %p99
      %p101 = scmp.ne.s32.totalorder %s90, %s93
      %p102 = scmp.eq.s32.totalorder %s19, 1
      %p103 = por %p101, %p102
      %p104 = scmp.ne.s32.totalorder %s93, %s94
      %p105 = scmp.eq.s32.totalorder %s19, 0
      %p106 = por %p104, %p105
      %p107 = scmp.ne.s32.totalorder %s93, %s94
      %p108 = scmp.eq.s32.totalorder %s20, 1
      %p109 = por %p107, %p108
      %p111 = scmp.ne.s32.totalorder %s94, %s110
      %p112 = scmp.eq.s32.totalorder %s20, 0
      %p113 = por %p111, %p112
      %p114 = scmp.le.s32.totalorder 1, %s14
      %p115 = scmp.lt.s32.totalorder %s14, 3
      %p116 = pnand %p114, %p115
      %p117 = pneg %p116
      // Predicated region
      $region9: #{tpu_custom_call.1} parent=5 // pred_check
        _
      $region10: #{tpu_custom_call.1} parent=5 // pred_check_branch
        %119 = sbr.rel (%p116) target = $region12
      $region11: #{tpu_custom_call.1} parent=5 // pred_region
        %s120 = ssub.s32 %s14, 1
      $region12: #{tpu_custom_call.1} parent=5 // pred_fallthru
        _
      %p121 = scmp.lt.s32.totalorder %s14, 2
      // Predicated region
      $region13: #{tpu_custom_call.1} parent=5 // pred_check
        %p122 = pneg %p121
      $region14: #{tpu_custom_call.1} parent=5 // pred_check_branch
        %124 = sbr.rel (%p122) target = $region16
      $region15: #{tpu_custom_call.1} parent=5 // pred_region
        // Predicated region
        $region17: #{tpu_custom_call.1} parent=15 // pred_check
          %p125 = pneg %p48
        $region18: #{tpu_custom_call.1} parent=15 // pred_check_branch
          %127 = sbr.rel (%p125) target = $region20
        $region19: #{tpu_custom_call.1} parent=15 // pred_region
          %s128 = sand.u32 %s38, 1
          %s129 = scalar_lea.sflag [#allocation6], %s128
          %s130 = sand.u32 %s38, 1
          %s131 = smul.addr %s130, 32
          %s132 = scalar_lea.vmem [#allocation5], %s131
          %s133 = smul.u32 2, %s21
          %s134 = smul.u32 2, %s22
          %s136 = ssub.s32 512, 512
          %137 = vsyncadd %s129, %s136
          %s138 = smul.addr %s133, 2
          %s139 = sadd.s32 %s134, %s138
          %s140 = smul.addr %s139, 128
          %s141 = scalar_lea.hbm %s0, %s140
          %s142 = sshll.u32 %s132, 4
          %s143 = int_to_ptr.vmem [resolvable:$true] %s142
          %148 = dma.hbm_to_vmem [thread:$0]  %s141, 512, %s143, %s129, 256, 256, 16
        $region20: #{tpu_custom_call.1} parent=15 // pred_fallthru
          _
        // Predicated region
        $region21: #{tpu_custom_call.1} parent=15 // pred_check
          %p149 = pneg %p74
        $region22: #{tpu_custom_call.1} parent=15 // pred_check_branch
          %151 = sbr.rel (%p149) target = $region24
        $region23: #{tpu_custom_call.1} parent=15 // pred_region
          %s152 = smul.u32 2, %s21
          %p153 = scmp.lt.s32.totalorder %s152, 3
          %s154 = scalar_select %p153, %s152, 3
          %s155 = smul.addr %s154, 8
          %s156 = scalar_lea.vmem %s1, %s155
          %s157 = smul.u32 2, %s21
        $region24: #{tpu_custom_call.1} parent=15 // pred_fallthru
          _
      $region16: #{tpu_custom_call.1} parent=5 // pred_fallthru
        _
      %p158 = scmp.le.s32.totalorder 1, %s14
      %p159 = scmp.lt.s32.totalorder %s14, 3
      %p160 = pnand %p158, %p159
      %p161 = pneg %p160
      // Predicated region
      $region25: #{tpu_custom_call.1} parent=5 // pred_check
        _
      $region26: #{tpu_custom_call.1} parent=5 // pred_check_branch
        %163 = sbr.rel (%p160) target = $region28
      $region27: #{tpu_custom_call.1} parent=5 // pred_region
        %s164 = ssub.s32 %s14, 1
        %s165 = sand.u32 %s41, 1
        %s166 = scalar_lea.sflag [#allocation6], %s165
        %s167 = sand.u32 %s41, 1
        %s168 = smul.addr %s167, 32
        %s169 = scalar_lea.vmem [#allocation5], %s168
        // Predicated region
        $region29: #{tpu_custom_call.1} parent=27 // pred_check
          %p170 = pneg %p54
        $region30: #{tpu_custom_call.1} parent=27 // pred_check_branch
          %172 = sbr.rel (%p170) target = $region32
        $region31: #{tpu_custom_call.1} parent=27 // pred_region
          %173 = dma.done %s166, 512
        $region32: #{tpu_custom_call.1} parent=27 // pred_fallthru
          _
        %s174 = sand.u32 %s41, 1
        %s175 = scalar_lea.sflag [#allocation6], %s174
        %s176 = sand.u32 %s41, 1
        %s177 = smul.addr %s176, 32
        %s178 = scalar_lea.vmem [#allocation5], %s177
        %p179 = pneg %p54
        %p180 = pneg %p51
        %s181 = smul.u32 2, %s23
        %p182 = scmp.lt.s32.totalorder %s181, 3
        %s183 = scalar_select %p182, %s181, 3
        %s184 = smul.addr %s183, 8
        %s185 = scalar_lea.vmem %s1, %s184
        %p186 = pneg %p80
        %p187 = pneg %p77
        %p188 = pneg %p106
        %p189 = pneg %p103
        %s190 = sand.u32 %s93, 1
        %s191 = scalar_lea.sflag [#allocation7], %s190
        %s192 = sand.u32 %s93, 1
        %s193 = smul.addr %s192, 8
        %s194 = scalar_lea.vmem [#allocation8], %s193
        %s195 = smul.u32 2, %s23
        %s196 = smul.u32 2, %s24
        %s197 = smul.u32 2, %s23
        %p198 = scmp.lt.s32.totalorder %s197, 3
        %s199 = scalar_select %p198, %s197, 3
        %s200 = smul.addr %s199, 8
        %s201 = scalar_lea.vmem %s1, %s200
        %s202 = smul.u32 2, %s23
        %p203 = scmp.eq.s32.totalorder %s24, 0
        // Predicated region
        $region33: #{tpu_custom_call.1} parent=27 // pred_check
          %p204 = pneg %p203
        $region34: #{tpu_custom_call.1} parent=27 // pred_check_branch
          %206 = sbr.rel (%p204) target = $region36
        $region35: #{tpu_custom_call.1} parent=27 // pred_region
          %vm207 = vcmask 7168
          %208 = vst.msk [vmem:[#allocation2] sm:$0xff] %vm207, -inf
          %209 = vst.msk [vmem:[#allocation2 + $0x8] sm:$0xff] %vm207, -inf
          %210 = vst.msk [vmem:[#allocation3] sm:$0xff] %vm207, 0.0
          %211 = vst.msk [vmem:[#allocation3 + $0x8] sm:$0xff] %vm207, 0.0
          %212 = vst.msk [vmem:[#allocation4] sm:$0xff] %vm207, 0.0
          %213 = vst.msk [vmem:[#allocation4 + $0x8] sm:$0xff] %vm207, 0.0
        $region36: #{tpu_custom_call.1} parent=27 // pred_fallthru
          _
        %v214 = vld [vmem:[%s169] sm:$0xff]
        %v215 = vld [vmem:[%s169 + $0x8] sm:$0xff]
        %v216 = vld [vmem:[%s169 + $0x10] sm:$0xff]
        %v217 = vld [vmem:[%s169 + $0x18] sm:$0xff]
        %v218 = vld [vmem:[%s201] sm:$0xff]
        %v219 = vld [vmem:[%s201 + $0x8] sm:$0xff]
        %v220 = vlaneseq
        %v221 = vand.u32 %v220, 127
        %v222 = vadd.s32 %v221, 128
        %s223 = smul.u32 %s24, 256
        %v224 = vstv %s223
        %v225 = vadd.s32 %v221, %v224
        %v226 = vadd.s32 %v222, %v224
        %v227 = vld [vmem:[#allocation2] sm:$0xff]
        %v228 = vld [vmem:[#allocation2 + $0x8] sm:$0xff]
        %v229 = vmax.f32 %v214, %v215
        %230 = vmax.xlane.f32.xlu0 %v229
        %v231 = vpop.xlane.xlu0 %230
        %v232 = vmax.f32 %v216, %v217
        %233 = vmax.xlane.f32.xlu0 %v232
        %v234 = vpop.xlane.xlu0 %233
        %v235 = vmax.f32 %v227, %v231
        %v236 = vmax.f32 %v228, %v234
        %v237 = vsub.f32 %v227, %v235
        %v238 = vsub.f32 %v228, %v236
        %v239 = vmul.f32 %v237, 1.442695
        %v240 = vpow.pop %v239
        %v241 = vmul.f32 %v238, 1.442695
        %v242 = vpow.pop %v241
        %v243 = vld [vmem:[#allocation3] sm:$0xff]
        %v244 = vld [vmem:[#allocation3 + $0x8] sm:$0xff]
        %v245 = vmul.f32 %v240, %v243
        %v246 = vmul.f32 %v242, %v244
        %248 = vset.pattern.permute.xlu0 0
        %249 = vperm.xlu0 %248, %v235
        %v250 = vpop.permute.xlu0 %249
        %253 = vset.pattern.permute.xlu0 0
        %254 = vperm.xlu0 %253, %v236
        %v255 = vpop.permute.xlu0 %254
        %v257 = vsub.f32 %v214, %v250
        %v258 = vsub.f32 %v215, %v250
        %v259 = vsub.f32 %v216, %v255
        %v260 = vsub.f32 %v217, %v255
        %v261 = vmul.f32 %v257, 1.442695
        %v262 = vpow.pop %v261
        %v263 = vmul.f32 %v258, 1.442695
        %v264 = vpow.pop %v263
        %v265 = vmul.f32 %v259, 1.442695
        %v266 = vpow.pop %v265
        %v267 = vmul.f32 %v260, 1.442695
        %v268 = vpow.pop %v267
        %v269 = vadd.f32 %v262, %v264
        %270 = vadd.xlane.f32.xlu0 %v269
        %v271 = vpop.xlane.xlu0 %270
        %v272 = vadd.f32 %v266, %v268
        %273 = vadd.xlane.f32.xlu0 %v272
        %v274 = vpop.xlane.xlu0 %273
        %v275 = vadd.f32 %v245, %v271
        %v276 = vadd.f32 %v246, %v274
        %vm277 = vcmask 7168
        %278 = vst.msk [vmem:[#allocation3] sm:$0xff] %vm277, %v275
        %279 = vst.msk [vmem:[#allocation3 + $0x8] sm:$0xff] %vm277, %v276
        %v280 = vld [vmem:[#allocation4] sm:$0xff]
        %v281 = vld [vmem:[#allocation4 + $0x8] sm:$0xff]
        %282 = vset.pattern.permute.xlu0 0
        %283 = vperm.xlu0 %282, %v218
        %v284 = vpop.permute.xlu0 %283
        %285 = vset.pattern.permute.xlu0 0
        %286 = vperm.xlu0 %285, %v219
        %v287 = vpop.permute.xlu0 %286
        %vm288 = vcmp.eq.s32.totalorder %v225, %v284
        %vm289 = vcmp.eq.s32.totalorder %v226, %v284
        %vm290 = vcmp.eq.s32.totalorder %v225, %v287
        %vm291 = vcmp.eq.s32.totalorder %v226, %v287
        %v292 = vsel %vm288, %v214, 0.0
        %v293 = vsel %vm289, %v215, 0.0
        %v294 = vsel %vm290, %v216, 0.0
        %v295 = vsel %vm291, %v217, 0.0
        %v296 = vadd.f32 %v292, %v293
        %297 = vadd.xlane.f32.xlu0 %v296
        %v298 = vpop.xlane.xlu0 %297
        %v299 = vadd.f32 %v294, %v295
        %300 = vadd.xlane.f32.xlu0 %v299
        %v301 = vpop.xlane.xlu0 %300
        %v302 = vadd.f32 %v280, %v298
        %v303 = vadd.f32 %v281, %v301
        %304 = vst.msk [vmem:[#allocation4] sm:$0xff] %vm277, %v302
        %305 = vst.msk [vmem:[#allocation4 + $0x8] sm:$0xff] %vm277, %v303
        %306 = vst.msk [vmem:[#allocation2] sm:$0xff] %vm277, %v235
        %307 = vst.msk [vmem:[#allocation2 + $0x8] sm:$0xff] %vm277, %v236
        // Predicated region
        $region37: #{tpu_custom_call.1} parent=27 // pred_check
          %p308 = pneg %p203
        $region38: #{tpu_custom_call.1} parent=27 // pred_check_branch
          %310 = sbr.rel (%p308) target = $region40
        $region39: #{tpu_custom_call.1} parent=27 // pred_region
          %v311 = vld [vmem:[#allocation3] sm:$0xff]
          %v312 = vld [vmem:[#allocation3 + $0x8] sm:$0xff]
          %v313 = vlog2.pop %v311
          %v314 = vmul.f32 %v313, 0.6931472
          %v315 = vlog2.pop %v312
          %v316 = vmul.f32 %v315, 0.6931472
          %v317 = vld [vmem:[#allocation2] sm:$0xff]
          %v318 = vld [vmem:[#allocation2 + $0x8] sm:$0xff]
          %v319 = vadd.f32 %v314, %v317
          %v320 = vadd.f32 %v316, %v318
          %v321 = vld [vmem:[#allocation4] sm:$0xff]
          %v322 = vld [vmem:[#allocation4 + $0x8] sm:$0xff]
          %v323 = vsub.f32 %v319, %v321
          %v324 = vsub.f32 %v320, %v322
          %v325 = vlaneseq
          %v326 = vshrl.u32 %v325, 7
          %v327 = vadd.s32 %v326, 8
          %s328 = smul.u32 %s23, 16
          %v329 = vstv %s328
          %v330 = vadd.s32 %v326, %v329
          %v331 = vadd.s32 %v327, %v329
          %vm332 = vcmp.lt.s32.totalorder %v330, 24
          %vm333 = vcmp.lt.s32.totalorder %v331, 24
          %v334 = vsel %vm332, %v323, 0.0
          %v335 = vsel %vm333, %v324, 0.0
          %v336 = vsel %vm277, %v334, 0.0
          %v337 = vsel %vm277, %v335, 0.0
          %v338 = vadd.f32 %v336, %v337
          %339 = vadd.xlane.f32.xlu0 %v338
          %v340 = vpop.xlane.xlu0 %339
          %v341 = vrot.slane %v340, 4
          %v342 = vadd.f32 %v340, %v341
          %v343 = vrot.slane %v342, 2
          %v344 = vadd.f32 %v342, %v343
          %v345 = vrot.slane %v344, 1
          %v346 = vadd.f32 %v344, %v345
          %s347 = vtos %v346
          %v348 = vstv %s347
          %349 = vst [vmem:[%s194] sm:$0xff] %v348
        $region40: #{tpu_custom_call.1} parent=27 // pred_fallthru
          _
        %s350 = sand.u32 %s93, 1
        %s351 = scalar_lea.sflag [#allocation7], %s350
        %s352 = sand.u32 %s93, 1
        %s353 = smul.addr %s352, 8
        %s354 = scalar_lea.vmem [#allocation8], %s353
        // Predicated region
        $region41: #{tpu_custom_call.1} parent=27 // pred_check
          %p355 = pneg %p103
        $region42: #{tpu_custom_call.1} parent=27 // pred_check_branch
          %357 = sbr.rel (%p355) target = $region44
        $region43: #{tpu_custom_call.1} parent=27 // pred_region
          %s359 = ssub.s32 128, 128
          %360 = vsyncadd %s351, %s359
          %s361 = smul.addr %s23, 128
          %s362 = scalar_lea.hbm %s2, %s361
          %s364 = sshll.u32 %s354, 4
          %s365 = int_to_ptr.vmem [resolvable:$true] %s364
          %367 = dma.vmem_to_hbm [thread:$0]  %s365, 128, %s362, %s351
        $region44: #{tpu_custom_call.1} parent=27 // pred_fallthru
          _
      $region28: #{tpu_custom_call.1} parent=5 // pred_fallthru
        _
      %p368 = scmp.le.s32.totalorder 2, %s14
      // Predicated region
      $region45: #{tpu_custom_call.1} parent=5 // pred_check
        %p369 = pneg %p368
      $region46: #{tpu_custom_call.1} parent=5 // pred_check_branch
        %371 = sbr.rel (%p369) target = $region48
      $region47: #{tpu_custom_call.1} parent=5 // pred_region
        %s372 = ssub.s32 %s14, 2
        // Predicated region
        $region49: #{tpu_custom_call.1} parent=47 // pred_check
          %p373 = pneg %p109
        $region50: #{tpu_custom_call.1} parent=47 // pred_check_branch
          %375 = sbr.rel (%p373) target = $region52
        $region51: #{tpu_custom_call.1} parent=47 // pred_region
          %s376 = sand.u32 %s94, 1
          %s377 = scalar_lea.sflag [#allocation7], %s376
          %s378 = sand.u32 %s94, 1
          %s379 = smul.addr %s378, 8
          %s380 = scalar_lea.vmem [#allocation8], %s379
          %381 = dma.done %s377, 128
        $region52: #{tpu_custom_call.1} parent=47 // pred_fallthru
          _
      $region48: #{tpu_custom_call.1} parent=5 // pred_fallthru
        _
    $region6: #{tpu_custom_call.1} parent=1 // loop_footer
      %s18 = sadd.s32 1, %s14
    $region7: #{tpu_custom_call.1} parent=1 // loop_footer_branch
      %13 = sbr.rel target = $region3
    $region8: #{tpu_custom_call.1} parent=1 // loop_exit
      _
    %382 = vsyncpa [#allocation6], 1
    %s383 = scalar_lea.sflag [#allocation6], 1
    %384 = vsyncpa %s383, 1
    %385 = vsyncpa [#allocation7], 1
    %s386 = scalar_lea.sflag [#allocation7], 1
    %387 = vsyncpa %s386, 1

</llo_original>
